<compile_context>
chip_gen: v5e
topology: v5e:2x2
jax: 0.10.0
libtpu: 0.0.40
codegen_flags: <defaults>
</compile_context>

<pallas_src>
import functools

import jax
import jax.numpy as jnp
from jax.experimental import pallas as pl
from jax.experimental.pallas import tpu as pltpu


# Finite large-negative pad for the class axis: exp(pad - m) underflows to 0,
# max() is unaffected, and (unlike -inf) it can never produce NaN via inf-inf.
_NEG_PAD = -1.0e30


def _round_up(x, m):
    return ((x + m - 1) // m) * m


def _xent_kernel(feature_ref, label_ref, out_ref, acc_ref, *olse_refs,
                 n_valid, tn, tc, steps, c_steps):
    """Cross-entropy partial-sum kernel.

    grid = (n_splits, steps, c_steps):
      axis 0: batch split ("parallel" -> one per TensorCore on v7x megacore)
      axis 1: batch tiles within the split (reduction)
      axis 2: class chunks (reduction, online logsumexp when c_steps > 1)

    feature_ref: (tn, tc) logits chunk (VMEM)
    label_ref:   (tn, 1)  int32 labels (VMEM)
    out_ref:     (1, 1)   f32 per-split partial sum (SMEM)
    acc_ref:     (tn, 1)  f32 per-row loss accumulator (VMEM scratch)
    olse_refs:   (m, l, ll) running max / running sum / label-logit scratch,
                 only allocated when c_steps > 1.
    """
    s = pl.program_id(0)
    i = pl.program_id(1)
    c = pl.program_id(2)

    @pl.when(jnp.logical_and(i == 0, c == 0))
    def _():
        acc_ref[...] = jnp.zeros_like(acc_ref)

    logits = feature_ref[...].astype(jnp.float32)        # (tn, tc) f32
    labels = label_ref[...]                              # (tn, 1) int32

    # one-hot gather of the label logit restricted to this class chunk
    cls = c * tc + jax.lax.broadcasted_iota(jnp.int32, logits.shape, 1)
    chunk_label_logit = jnp.sum(jnp.where(cls == labels, logits, 0.0),
                                axis=-1, keepdims=True)  # (tn, 1)

    tile_base = (s * steps + i) * tn

    def _accumulate(per_row):
        # Padded-row masking kept off the hot path: only tiles overlapping the
        # padded tail pay the lane-sparse iota/compare/select.
        is_full = tile_base + tn <= n_valid

        @pl.when(is_full)
        def _():
            acc_ref[...] += per_row

        @pl.when(jnp.logical_not(is_full))
        def _():
            row = tile_base + jax.lax.broadcasted_iota(jnp.int32, per_row.shape, 0)
            acc_ref[...] += jnp.where(row < n_valid, per_row, 0.0)

    if c_steps == 1:
        # Whole class axis in one slab: plain numerically-stable logsumexp.
        m = jnp.max(logits, axis=-1, keepdims=True)
        lse = m + jnp.log(jnp.sum(jnp.exp(logits - m), axis=-1, keepdims=True))
        _accumulate(lse - chunk_label_logit)
    else:
        # Online logsumexp across class chunks.
        m_ref, l_ref, ll_ref = olse_refs

        @pl.when(c == 0)
        def _():
            m_ref[...] = jnp.full_like(m_ref, _NEG_PAD)
            l_ref[...] = jnp.zeros_like(l_ref)
            ll_ref[...] = jnp.zeros_like(ll_ref)

        m_prev = m_ref[...]
        m_new = jnp.maximum(m_prev, jnp.max(logits, axis=-1, keepdims=True))
        alpha = jnp.exp(m_prev - m_new)                  # 0 on the first chunk
        l_ref[...] = alpha * l_ref[...] + jnp.sum(jnp.exp(logits - m_new),
                                                  axis=-1, keepdims=True)
        m_ref[...] = m_new
        ll_ref[...] += chunk_label_logit

        @pl.when(c == c_steps - 1)
        def _():
            lse = m_ref[...] + jnp.log(l_ref[...])
            _accumulate(lse - ll_ref[...])

    @pl.when(jnp.logical_and(i == steps - 1, c == c_steps - 1))
    def _():
        out_ref[0, 0] = jnp.sum(acc_ref[...])            # one-time epilogue reduce


def _vmem_capacity_bytes():
    """Physical VMEM of the current TPU generation (conservative fallback)."""
    try:
        info = pltpu.get_tpu_info()
        for attr in ("vmem_capacity_bytes", "vmem_bytes", "vmem_size_bytes"):
            v = getattr(info, attr, None)
            if v:
                return int(v)
    except Exception:
        pass
    return 64 * 1024 * 1024  # v7x per-TensorCore VMEM (smallest of the three gens)


def cross_entropy_loss(feature, label, *, block_rows=None, class_block=None):
    """Mean cross-entropy over the batch, computed in a Pallas TPU kernel.

    feature: (N, C) float logits (f32 or bf16; bf16 halves HBM traffic, math is f32)
    label:   (N,)   integer class indices in [0, C)
    block_rows / class_block: optional tile-size overrides (testing / tuning).
    """
    N, C = feature.shape
    itemsize = jnp.dtype(feature.dtype).itemsize
    mult = {4: 8, 2: 16, 1: 32}.get(itemsize, 8)      # min sublane multiple per dtype

    # ---- VMEM budget: give the double-buffered logits stream ~2/3 of it ----
    phys_vmem = _vmem_capacity_bytes()
    vmem_target = max(32 << 20, phys_vmem - (16 << 20))
    feat_buf_budget = vmem_target // 3                # bytes per logits buffer

    n_ceil = _round_up(N, mult)
    lane_c = _round_up(C, 128)                        # lane-padded slab width

    # ---- batch tile (rows per logits slab) ----
    tn_full = feat_buf_budget // (lane_c * itemsize)  # rows of a full-width slab per buffer
    if block_rows is not None:
        tn = block_rows
    elif tn_full >= 256 or C <= 128:
        tn = min(tn_full, 8192)                       # single-slab regime: as large as VMEM allows
    else:
        tn = 256                                      # large-C regime: split the class axis
    tn = max(mult, (min(tn, n_ceil) // mult) * mult)

    # ---- class tile ----
    if class_block is not None:
        tc = min(_round_up(class_block, 128), lane_c)
    else:
        tc = (feat_buf_budget // (tn * itemsize)) // 128 * 128
        tc = max(128, min(tc, lane_c))
    if tc >= C:
        tc, c_pad, c_steps = C, C, 1                  # single slab; block == full class dim
    else:
        c_pad = _round_up(C, tc)
        c_steps = c_pad // tc

    # ---- pad class axis (split path) with a large negative (exp -> 0) ----
    if c_pad != C:
        feature = jnp.pad(feature, ((0, 0), (0, c_pad - C)),
                          constant_values=_NEG_PAD)

    # ---- pad batch; force an even tile count so both v7x TensorCores get work ----
    n_pad = _round_up(N, tn)
    total_tiles = n_pad // tn
    if total_tiles >= 2 and total_tiles % 2 == 1:
        total_tiles += 1
        n_pad += tn
    n_splits = 2 if total_tiles >= 2 else 1
    steps = total_tiles // n_splits

    label2 = label.astype(jnp.int32).reshape(N, 1)
    if n_pad != N:
        feature = jnp.pad(feature, ((0, n_pad - N), (0, 0)))   # zero rows, masked in-kernel
        label2 = jnp.pad(label2, ((0, n_pad - N), (0, 0)))

    # ---- honest scoped-VMEM accounting (lane-padded widths) ----
    lane_tc = _round_up(tc, 128)
    n_scratch = 1 if c_steps == 1 else 4
    needed = (2 * tn * lane_tc * itemsize             # logits double buffer
              + 2 * tn * 128 * 4                      # labels double buffer (lane-padded)
              + n_scratch * tn * 128 * 4              # acc (+ m,l,ll) scratch
              + (4 << 20))                            # slack for Mosaic internals
    vmem_limit = int(min(max(needed, 16 << 20), phys_vmem - (8 << 20)))

    scratch = [pltpu.VMEM((tn, 1), jnp.float32)]      # acc
    if c_steps > 1:
        scratch += [pltpu.VMEM((tn, 1), jnp.float32) for _ in range(3)]  # m, l, ll

    kernel = functools.partial(_xent_kernel, n_valid=N, tn=tn, tc=tc,
                               steps=steps, c_steps=c_steps)

    cost = pl.CostEstimate(
        flops=5 * N * C,
        transcendentals=N * C,
        bytes_accessed=N * C * itemsize + N * 4 + n_splits * 4,
    )

    partials = pl.pallas_call(
        kernel,
        out_shape=jax.ShapeDtypeStruct((n_splits, 1), jnp.float32),
        grid_spec=pltpu.PrefetchScalarGridSpec(
            num_scalar_prefetch=0,
            grid=(n_splits, steps, c_steps),
            in_specs=[
                pl.BlockSpec((tn, tc), lambda s, i, c, _st=steps: (s * _st + i, c)),
                pl.BlockSpec((tn, 1), lambda s, i, c, _st=steps: (s * _st + i, 0)),
            ],
            out_specs=pl.BlockSpec((1, 1), lambda s, i, c: (s, 0),
                                   memory_space=pltpu.SMEM),
            scratch_shapes=scratch,
        ),
        compiler_params=pltpu.CompilerParams(
            dimension_semantics=("parallel", "arbitrary", "arbitrary"),
            vmem_limit_bytes=vmem_limit,
        ),
        cost_estimate=cost,
    )(feature, label2)

    return jnp.sum(partials) / jnp.float32(N)


def _reference_loss(feature, label):
    # pure-JAX reference (matches torch.nn.functional.cross_entropy, mean reduction)
    logp = jax.nn.log_softmax(feature.astype(jnp.float32), axis=-1)
    nll = -jnp.take_along_axis(logp, label[:, None].astype(jnp.int32), axis=-1)
    return jnp.mean(nll)


if __name__ == "__main__":
    key = jax.random.PRNGKey(0)
    k_feat, k_lab = jax.random.split(key)

    def check(name, N, C, dtype=jnp.float32, tol=1e-5, **kw):
        f = (jax.random.normal(k_feat, (N, C), dtype=jnp.float32) * 3.0).astype(dtype)
        l = jax.random.randint(k_lab, (N,), 0, C, dtype=jnp.int32)
        out = jax.block_until_ready(cross_entropy_loss(f, l, **kw))
        ref = jax.block_until_ready(_reference_loss(f.astype(jnp.float32), l))
        assert jnp.allclose(out, ref, atol=tol, rtol=tol), (name, out, ref)

    # small single-tile case (batch=16, classes=32)
    check("tiny", 16, 32)
    # ragged multi-row batch, full-C slab
    check("ragged", 1000, 256)
    # force the class-split online-logsumexp path (C padded 300 -> 384, 3 chunks)
    check("class_split", 64, 300, class_block=128)
    # force multiple batch tiles: odd tile count padded to even for the 2-way split
    check("megacore_split", 300, 256, block_rows=64)
    # bf16 fast path (in-kernel math stays f32)
    check("bf16", 128, 64, dtype=jnp.bfloat16, tol=1e-4)

    print("KERNEL_OK")
</pallas_src>

<mosaic_0001>
module attributes {stable_mosaic.version = 11 : i64} {
  func.func @_xent_kernel(%arg0: i32, %arg1: i32, %arg2: i32, %arg3: memref<16x32xf32, #tpu.memory_space<vmem>>, %arg4: memref<16x1xi32, #tpu.memory_space<vmem>>, %arg5: memref<1x1xf32, #tpu.memory_space<smem>>, %arg6: memref<16x1xf32, #tpu.memory_space<vmem>>) attributes {dimension_semantics = [#tpu.dimension_semantics<parallel>, #tpu.dimension_semantics<arbitrary>, #tpu.dimension_semantics<arbitrary>], iteration_bounds = array<i64: 1, 1, 1>, scalar_prefetch = 0 : i64, scratch_operands = 1 : i64, tpu.core_type = #tpu.core_type<tc>, window_params = [{transform_indices = @transform_0, window_bounds = array<i64: 16, 32>}, {transform_indices = @transform_1, window_bounds = array<i64: 16, 1>}, {transform_indices = @transform_2, window_bounds = array<i64: 1, 1>}]} {
    %c0_i32 = arith.constant 0 : i32
    %0 = arith.cmpi eq, %arg1, %c0_i32 : i32
    %c0_i32_0 = arith.constant 0 : i32
    %1 = arith.cmpi eq, %arg2, %c0_i32_0 : i32
    %2 = arith.andi %0, %1 : i1
    %3 = arith.extui %2 : i1 to i32
    %c0_i32_1 = arith.constant 0 : i32
    %4 = arith.cmpi ne, %3, %c0_i32_1 : i32
    scf.if %4 {
      %cst_15 = arith.constant 0.000000e+00 : f32
      %42 = vector.broadcast %cst_15 : f32 to vector<16x1xf32>
      %c0_16 = arith.constant 0 : index
      %c0_17 = arith.constant 0 : index
      %43 = vector.load %arg6[%c0_16, %c0_17] : memref<16x1xf32, #tpu.memory_space<vmem>>, vector<16x1xf32>
      tpu.vector_store %arg6[%c0_16, %c0_17], %42 {strides = array<i32>} : memref<16x1xf32, #tpu.memory_space<vmem>>, vector<16x1xf32>,
    } else {
    }
    %c0 = arith.constant 0 : index
    %c0_2 = arith.constant 0 : index
    %5 = vector.load %arg3[%c0, %c0_2] : memref<16x32xf32, #tpu.memory_space<vmem>>, vector<16x32xf32>
    %c0_3 = arith.constant 0 : index
    %c0_4 = arith.constant 0 : index
    %6 = vector.load %arg4[%c0_3, %c0_4] : memref<16x1xi32, #tpu.memory_space<vmem>>, vector<16x1xi32>
    %c32_i32 = arith.constant 32 : i32
    %7 = arith.muli %arg2, %c32_i32 : i32
    %8 = tpu.iota {dimensions = array<i32: 1>} : vector<16x32xi32>
    %9 = vector.broadcast %7 : i32 to vector<16x32xi32>
    %10 = arith.addi %9, %8 : vector<16x32xi32>
    %11 = vector.broadcast %6 : vector<16x1xi32> to vector<16x32xi32>
    %12 = arith.cmpi eq, %10, %11 : vector<16x32xi32>
    %cst = arith.constant 0.000000e+00 : f32
    %13 = vector.broadcast %cst : f32 to vector<16x32xf32>
    %14 = arith.select %12, %5, %13 : vector<16x32xi1>, vector<16x32xf32>
    %cst_5 = arith.constant dense<0.000000e+00> : vector<16xf32>
    %15 = vector.multi_reduction <add>, %14, %cst_5 [1] : vector<16x32xf32> to vector<16xf32>
    %16 = vector.shape_cast %15 : vector<16xf32> to vector<16x1xf32>
    %c1_i32 = arith.constant 1 : i32
    %17 = arith.muli %arg0, %c1_i32 : i32
    %18 = arith.addi %17, %arg1 : i32
    %c16_i32 = arith.constant 16 : i32
    %19 = arith.muli %18, %c16_i32 : i32
    %cst_6 = arith.constant dense<0xFF800000> : vector<16xf32>
    %20 = vector.multi_reduction <maximumf>, %5, %cst_6 [1] : vector<16x32xf32> to vector<16xf32>
    %21 = vector.shape_cast %20 : vector<16xf32> to vector<16x1xf32>
    %22 = vector.broadcast %21 : vector<16x1xf32> to vector<16x32xf32>
    %23 = arith.subf %5, %22 : vector<16x32xf32>
    %24 = math.exp %23 : vector<16x32xf32>
    %cst_7 = arith.constant dense<0.000000e+00> : vector<16xf32>
    %25 = vector.multi_reduction <add>, %24, %cst_7 [1] : vector<16x32xf32> to vector<16xf32>
    %26 = vector.shape_cast %25 : vector<16xf32> to vector<16x1xf32>
    %27 = math.log %26 : vector<16x1xf32>
    %28 = arith.addf %21, %27 : vector<16x1xf32>
    %29 = arith.subf %28, %16 : vector<16x1xf32>
    %c16_i32_8 = arith.constant 16 : i32
    %30 = arith.addi %19, %c16_i32_8 : i32
    %c16_i32_9 = arith.constant 16 : i32
    %31 = arith.cmpi sle, %30, %c16_i32_9 : i32
    %32 = arith.extui %31 : i1 to i32
    %c0_i32_10 = arith.constant 0 : i32
    %33 = arith.cmpi ne, %32, %c0_i32_10 : i32
    scf.if %33 {
      %c0_15 = arith.constant 0 : index
      %c0_16 = arith.constant 0 : index
      %42 = vector.load %arg6[%c0_15, %c0_16] : memref<16x1xf32, #tpu.memory_space<vmem>>, vector<16x1xf32>
      %43 = arith.addf %42, %29 : vector<16x1xf32>
      %c0_17 = arith.constant 0 : index
      %c0_18 = arith.constant 0 : index
      %44 = vector.load %arg6[%c0_17, %c0_18] : memref<16x1xf32, #tpu.memory_space<vmem>>, vector<16x1xf32>
      tpu.vector_store %arg6[%c0_17, %c0_18], %43 {strides = array<i32>} : memref<16x1xf32, #tpu.memory_space<vmem>>, vector<16x1xf32>,
    } else {
    }
    %true = arith.constant true
    %34 = arith.xori %31, %true : i1
    %35 = arith.extui %34 : i1 to i32
    %c0_i32_11 = arith.constant 0 : i32
    %36 = arith.cmpi ne, %35, %c0_i32_11 : i32
    scf.if %36 {
      %42 = tpu.iota {dimensions = array<i32: 0>} : vector<16x1xi32>
      %43 = vector.broadcast %19 : i32 to vector<16x1xi32>
      %44 = arith.addi %43, %42 : vector<16x1xi32>
      %c0_15 = arith.constant 0 : index
      %c0_16 = arith.constant 0 : index
      %45 = vector.load %arg6[%c0_15, %c0_16] : memref<16x1xf32, #tpu.memory_space<vmem>>, vector<16x1xf32>
      %c16_i32_17 = arith.constant 16 : i32
      %46 = vector.broadcast %c16_i32_17 : i32 to vector<16x1xi32>
      %47 = arith.cmpi slt, %44, %46 : vector<16x1xi32>
      %cst_18 = arith.constant 0.000000e+00 : f32
      %48 = vector.broadcast %cst_18 : f32 to vector<16x1xf32>
      %49 = arith.select %47, %29, %48 : vector<16x1xi1>, vector<16x1xf32>
      %50 = arith.addf %45, %49 : vector<16x1xf32>
      %c0_19 = arith.constant 0 : index
      %c0_20 = arith.constant 0 : index
      %51 = vector.load %arg6[%c0_19, %c0_20] : memref<16x1xf32, #tpu.memory_space<vmem>>, vector<16x1xf32>
      tpu.vector_store %arg6[%c0_19, %c0_20], %50 {strides = array<i32>} : memref<16x1xf32, #tpu.memory_space<vmem>>, vector<16x1xf32>,
    } else {
    }
    %c0_i32_12 = arith.constant 0 : i32
    %37 = arith.cmpi eq, %arg1, %c0_i32_12 : i32
    %c0_i32_13 = arith.constant 0 : i32
    %38 = arith.cmpi eq, %arg2, %c0_i32_13 : i32
    %39 = arith.andi %37, %38 : i1
    %40 = arith.extui %39 : i1 to i32
    %c0_i32_14 = arith.constant 0 : i32
    %41 = arith.cmpi ne, %40, %c0_i32_14 : i32
    scf.if %41 {
      %c0_15 = arith.constant 0 : index
      %c0_16 = arith.constant 0 : index
      %42 = vector.load %arg6[%c0_15, %c0_16] : memref<16x1xf32, #tpu.memory_space<vmem>>, vector<16x1xf32>
      %43 = vector.shape_cast %42 : vector<16x1xf32> to vector<1x16x1xf32>
      %cst_17 = arith.constant dense<0.000000e+00> : vector<1xf32>
      %44 = vector.multi_reduction <add>, %43, %cst_17 [1, 2] : vector<1x16x1xf32> to vector<1xf32>
      %45 = vector.shape_cast %44 : vector<1xf32> to vector<1x1x1xf32>
      %46 = vector.extract %45[0, 0, 0] : f32 from vector<1x1x1xf32>
      %c0_18 = arith.constant 0 : index
      %c0_19 = arith.constant 0 : index
      %47 = memref.load %arg5[%c0_18, %c0_19] : memref<1x1xf32, #tpu.memory_space<smem>>
      memref.store %46, %arg5[%c0_18, %c0_19] : memref<1x1xf32, #tpu.memory_space<smem>>
    } else {
    }
    return
  }
  func.func @transform_0(%arg0: i32, %arg1: i32, %arg2: i32) -> (i32, i32) {
    %c1_i32 = arith.constant 1 : i32
    %0 = arith.muli %arg0, %c1_i32 : i32
    %1 = arith.addi %0, %arg1 : i32
    %c0_i32 = arith.constant 0 : i32
    return %1, %arg2 : i32, i32
  }
  func.func @transform_1(%arg0: i32, %arg1: i32, %arg2: i32) -> (i32, i32) {
    %c1_i32 = arith.constant 1 : i32
    %0 = arith.muli %arg0, %c1_i32 : i32
    %1 = arith.addi %0, %arg1 : i32
    %c0_i32 = arith.constant 0 : i32
    %c0_i32_0 = arith.constant 0 : i32
    return %1, %c0_i32 : i32, i32
  }
  func.func @transform_2(%arg0: i32, %arg1: i32, %arg2: i32) -> (i32, i32) {
    %c0_i32 = arith.constant 0 : i32
    %c0_i32_0 = arith.constant 0 : i32
    return %arg0, %c0_i32 : i32, i32
  }
}

</mosaic_0001>

<llo_original>
// kernel: tpu_custom_call.1
$region0: #{tpu_custom_call.1}
  #allocation0 [shape = 'u32[]', space=smem, size = 0x4, offset = 0x4, fixed_abs, tag = 'smem constant byte address 0x4 - core index']
  #allocation1 [shape = 'u32[72,128]{1,0:T(1,128)}', space=vmem, size = 0x9000, scoped, tag = 'internal scratch']
  #allocation2 [shape = 'f32[16,1]{1,0:T(8,128)}', space=vmem, size = 0x2000, scoped, tag = 'scratch operand']
  %s0 = inlined_call_operand.vmem [shape: f32[16,32], index: 0, kind: input, shape index: {}]
  %s1 = inlined_call_operand.vmem [shape: s32[16,1], index: 1, kind: input, shape index: {}]
  %s2 = inlined_call_operand.hbm [shape: f32[1,1], index: 2, kind: output, shape index: {}]
  %s3 = sld [smem:[#allocation0]]
  $region34: #{tpu_custom_call.1} parent=0
    _
  %s5 = ssub.s32 1, %s3
  %s6 = scalar_select 0, %s5, %s3
  $region1: #{tpu_custom_call.1} parent=0
    #allocation3 [shape = 'u8[512]{0}', space=smem, size = 0x200, scoped, tag = 'output window, operand 0, single buffered']
    #allocation4 [shape = 's32[1]{0}', space=sflag, size = 0x4, scoped, tag = 'scoped memory for tpu_custom_call.1']
    %7 = vsyncpa [#allocation4], 0
    // Predicated region
    $region2: #{tpu_custom_call.1} parent=1 // pred_check
      _
    $region3: #{tpu_custom_call.1} parent=1 // pred_check_branch
      %9 = sbr.rel (0) target = $region5
    $region4: #{tpu_custom_call.1} parent=1 // pred_region
      %s10 = sadd.s32 0, 0
      %s11 = smul.u32 2, %s10
      %p12 = scmp.lt.s32.totalorder %s11, 1
      %s13 = scalar_select %p12, %s11, 1
      %s14 = smul.addr %s13, 8
      %s15 = scalar_lea.vmem %s0, %s14
      %s16 = sadd.s32 0, 0
      %s17 = smul.u32 2, %s16
    $region5: #{tpu_custom_call.1} parent=1 // pred_fallthru
      _
    // Predicated region
    $region6: #{tpu_custom_call.1} parent=1 // pred_check
      _
    $region7: #{tpu_custom_call.1} parent=1 // pred_check_branch
      %19 = sbr.rel (0) target = $region9
    $region8: #{tpu_custom_call.1} parent=1 // pred_region
      %s20 = sadd.s32 0, 0
      %s21 = smul.u32 2, %s20
      %p22 = scmp.lt.s32.totalorder %s21, 1
      %s23 = scalar_select %p22, %s21, 1
      %s24 = smul.addr %s23, 8
      %s25 = scalar_lea.vmem %s1, %s24
      %s26 = sadd.s32 0, 0
      %s27 = smul.u32 2, %s26
    $region9: #{tpu_custom_call.1} parent=1 // pred_fallthru
      _
    %s28 = sadd.s32 0, 0
    %s29 = smul.u32 2, %s28
    %p30 = scmp.lt.s32.totalorder %s29, 1
    %s31 = scalar_select %p30, %s29, 1
    %s32 = smul.addr %s31, 8
    %s33 = scalar_lea.vmem %s0, %s32
    %s34 = sadd.s32 0, 0
    %s35 = smul.u32 2, %s34
    %p36 = scmp.lt.s32.totalorder %s35, 1
    %s37 = scalar_select %p36, %s35, 1
    %s38 = smul.addr %s37, 8
    %s39 = scalar_lea.vmem %s1, %s38
    %s40 = sadd.s32 0, 0
    %s41 = smul.u32 2, %s40
    %p42 = scmp.lt.s32.totalorder %s41, 1
    %s43 = scalar_select %p42, %s41, 1
    %s44 = smul.addr %s43, 8
    %s45 = scalar_lea.vmem %s0, %s44
    %s46 = sadd.s32 0, 0
    %s47 = smul.u32 2, %s46
    %s48 = sadd.s32 0, 0
    %s49 = smul.u32 2, %s48
    %p50 = scmp.lt.s32.totalorder %s49, 1
    %s51 = scalar_select %p50, %s49, 1
    %s52 = smul.addr %s51, 8
    %s53 = scalar_lea.vmem %s1, %s52
    %s54 = sadd.s32 0, 0
    %s55 = smul.u32 2, %s54
    %p56 = scmp.eq.s32.totalorder 0, 0
    %p57 = scmp.eq.s32.totalorder 0, 0
    %p58 = pnand %p56, %p57
    %p59 = pneg %p58
    // Predicated region
    $region10: #{tpu_custom_call.1} parent=1 // pred_check
      _
    $region11: #{tpu_custom_call.1} parent=1 // pred_check_branch
      %61 = sbr.rel (%p58) target = $region13
    $region12: #{tpu_custom_call.1} parent=1 // pred_region
      %vm62 = vcmask 7168
      %63 = vst.msk [vmem:[#allocation2] sm:$0xff] %vm62, 0.0
      %64 = vst.msk [vmem:[#allocation2 + $0x8] sm:$0xff] %vm62, 0.0
    $region13: #{tpu_custom_call.1} parent=1 // pred_fallthru
      _
    %v65 = vld [vmem:[%s45] sm:$0xff]
    %v66 = vld [vmem:[%s45 + $0x8] sm:$0xff]
    %v67 = vld [vmem:[%s53] sm:$0xff]
    %v68 = vld [vmem:[%s53 + $0x8] sm:$0xff]
    %s69 = smul.u32 0, 32
    %v70 = vlaneseq
    %v71 = vand.u32 %v70, 127
    %v72 = vstv %s69
    %v73 = vadd.s32 %v72, %v71
    %74 = vset.pattern.permute.xlu0 0
    %75 = vperm.xlu0 %74, %v67
    %v76 = vpop.permute.xlu0 %75
    %77 = vset.pattern.permute.xlu0 0
    %78 = vperm.xlu0 %77, %v68
    %v79 = vpop.permute.xlu0 %78
    %vm80 = vcmp.eq.s32.totalorder %v73, %v76
    %vm81 = vcmp.eq.s32.totalorder %v73, %v79
    %v82 = vsel %vm80, %v65, 0.0
    %v83 = vsel %vm81, %v66, 0.0
    %vm84 = vcmask 261120
    %v85 = vsel %vm84, %v82, 0.0
    %86 = vadd.xlane.f32.xlu0 %v85
    %v87 = vpop.xlane.xlu0 %86
    %v88 = vsel %vm84, %v83, 0.0
    %89 = vadd.xlane.f32.xlu0 %v88
    %v90 = vpop.xlane.xlu0 %89
    %s91 = sadd.s32 0, 0
    %s92 = smul.u32 %s91, 16
    %v93 = vsel %vm84, %v65, -inf
    %94 = vmax.xlane.f32.xlu0 %v93
    %v95 = vpop.xlane.xlu0 %94
    %v96 = vsel %vm84, %v66, -inf
    %97 = vmax.xlane.f32.xlu0 %v96
    %v98 = vpop.xlane.xlu0 %97
    %v99 = vsub.f32 %v65, %v95
    %v100 = vsub.f32 %v66, %v98
    %v101 = vmul.f32 %v99, 1.442695
    %v102 = vpow.pop %v101
    %v103 = vmul.f32 %v100, 1.442695
    %v104 = vpow.pop %v103
    %v105 = vsel %vm84, %v102, 0.0
    %106 = vadd.xlane.f32.xlu0 %v105
    %v107 = vpop.xlane.xlu0 %106
    %v108 = vsel %vm84, %v104, 0.0
    %109 = vadd.xlane.f32.xlu0 %v108
    %v110 = vpop.xlane.xlu0 %109
    %v111 = vlog2.pop %v107
    %v112 = vmul.f32 %v111, 0.6931472
    %v113 = vlog2.pop %v110
    %v114 = vmul.f32 %v113, 0.6931472
    %v115 = vadd.f32 %v95, %v112
    %v116 = vadd.f32 %v98, %v114
    %v117 = vsub.f32 %v115, %v87
    %v118 = vsub.f32 %v116, %v90
    %s119 = sadd.s32 %s92, 16
    %p120 = scmp.le.s32.totalorder %s119, 16
    // Predicated region
    $region14: #{tpu_custom_call.1} parent=1 // pred_check
      %p121 = pneg %p120
    $region15: #{tpu_custom_call.1} parent=1 // pred_check_branch
      %123 = sbr.rel (%p121) target = $region17
    $region16: #{tpu_custom_call.1} parent=1 // pred_region
      %v124 = vld [vmem:[#allocation2] sm:$0xff]
      %v125 = vld [vmem:[#allocation2 + $0x8] sm:$0xff]
      %v126 = vadd.f32 %v124, %v117
      %v127 = vadd.f32 %v125, %v118
      %vm128 = vcmask 7168
      %129 = vst.msk [vmem:[#allocation2] sm:$0xff] %vm128, %v126
      %130 = vst.msk [vmem:[#allocation2 + $0x8] sm:$0xff] %vm128, %v127
    $region17: #{tpu_custom_call.1} parent=1 // pred_fallthru
      _
    %p131 = scmp.gt.s32.totalorder %s119, 16
    // Predicated region
    $region18: #{tpu_custom_call.1} parent=1 // pred_check
      %p132 = pneg %p131
    $region19: #{tpu_custom_call.1} parent=1 // pred_check_branch
      %134 = sbr.rel (%p132) target = $region21
    $region20: #{tpu_custom_call.1} parent=1 // pred_region
      %v135 = vlaneseq
      %v136 = vshrl.u32 %v135, 7
      %v137 = vadd.s32 %v136, 8
      %v138 = vstv %s92
      %v139 = vadd.s32 %v138, %v136
      %v140 = vadd.s32 %v138, %v137
      %v141 = vld [vmem:[#allocation2] sm:$0xff]
      %v142 = vld [vmem:[#allocation2 + $0x8] sm:$0xff]
      %vm143 = vcmp.lt.s32.totalorder %v139, 16
      %vm144 = vcmp.lt.s32.totalorder %v140, 16
      %v145 = vsel %vm143, %v117, 0.0
      %v146 = vsel %vm144, %v118, 0.0
      %v147 = vadd.f32 %v141, %v145
      %v148 = vadd.f32 %v142, %v146
      %vm149 = vcmask 7168
      %150 = vst.msk [vmem:[#allocation2] sm:$0xff] %vm149, %v147
      %151 = vst.msk [vmem:[#allocation2 + $0x8] sm:$0xff] %vm149, %v148
    $region21: #{tpu_custom_call.1} parent=1 // pred_fallthru
      _
    // Predicated region
    $region22: #{tpu_custom_call.1} parent=1 // pred_check
      _
    $region23: #{tpu_custom_call.1} parent=1 // pred_check_branch
      %153 = sbr.rel (%p58) target = $region25
    $region24: #{tpu_custom_call.1} parent=1 // pred_region
      %v154 = vld [vmem:[#allocation2] sm:$0xff]
      %v155 = vld [vmem:[#allocation2 + $0x8] sm:$0xff]
      %vm156 = vcmask 7168
      %v157 = vsel %vm156, %v154, 0.0
      %v158 = vsel %vm156, %v155, 0.0
      %v159 = vadd.f32 %v157, %v158
      %160 = vadd.xlane.f32.xlu0 %v159
      %v161 = vpop.xlane.xlu0 %160
      %v162 = vrot.slane %v161, 4
      %v163 = vadd.f32 %v161, %v162
      %v164 = vrot.slane %v163, 2
      %v165 = vadd.f32 %v163, %v164
      %v166 = vrot.slane %v165, 1
      %v167 = vadd.f32 %v165, %v166
      %s168 = vtos %v167
      %s169 = scalar_lea.smem [#allocation3], 0
      %170 = sst [smem:[%s169]] %s168
    $region25: #{tpu_custom_call.1} parent=1 // pred_fallthru
      _
    // Predicated region
    $region26: #{tpu_custom_call.1} parent=1 // pred_check
      _
    $region27: #{tpu_custom_call.1} parent=1 // pred_check_branch
      %172 = sbr.rel (0) target = $region29
    $region28: #{tpu_custom_call.1} parent=1 // pred_region
      %174 = vsyncadd [#allocation4], 0
      %s176 = sshll.u32 %s2, 4
      %s177 = int_to_ptr.hbm [resolvable:$true] %s176
      %179 = dma.smem_to_hbm [#allocation3], 16, %s177, [#allocation4]
    $region29: #{tpu_custom_call.1} parent=1 // pred_fallthru
      _
    // Predicated region
    $region30: #{tpu_custom_call.1} parent=1 // pred_check
      _
    $region31: #{tpu_custom_call.1} parent=1 // pred_check_branch
      %181 = sbr.rel (0) target = $region33
    $region32: #{tpu_custom_call.1} parent=1 // pred_region
      %183 = dma.done [#allocation4], 16
    $region33: #{tpu_custom_call.1} parent=1 // pred_fallthru
      _
    %184 = sfence
    %185 = vsyncpa [#allocation4], 1

</llo_original>
